<compile_context>
chip_gen: v7x
topology: tpu7x:2x2x1
jax: 0.10.0
libtpu: 0.0.40
codegen_flags: <defaults>
</compile_context>

<pallas_src>
import functools

import jax
import jax.numpy as jnp
from jax.experimental import pallas as pl
from jax.experimental.pallas import tpu as pltpu


def _csam_kernel(w_ref, b_ref, g_ref, x_ref, o_ref, *, C, H, W):
    # w_ref: (27,) SMEM -- Conv3d weight (1,1,3,3,3) flattened (kd, kh, kw)
    # b_ref: (1,)  SMEM -- Conv3d bias
    # g_ref: (1,)  SMEM -- gamma
    # x_ref: (R, HW) VMEM -- input block, R = batch_tile * C, HW = H * W
    # o_ref: (R, HW) VMEM -- output block
    R, HW = x_ref.shape
    x = x_ref[...].astype(jnp.float32)

    # ---- index maps built in-kernel (no HBM index planes) -------------------
    lane = jax.lax.broadcasted_iota(jnp.int32, (R, HW), 1)   # flattened h*W + w
    sub = jax.lax.broadcasted_iota(jnp.int32, (R, HW), 0)    # flattened b*C + c
    col = (lane & (W - 1)) if (W & (W - 1)) == 0 else lane % W
    cid = (sub & (C - 1)) if (C & (C - 1)) == 0 else sub % C

    # Validity of reading the (h+dh, w+dw) neighbour (zero padding outside the image).
    w_ok = {-1: col >= 1, 0: None, 1: col <= W - 2}
    h_ok = {-1: lane >= W, 0: None, 1: lane < (H - 1) * W}   # row >= 1 / row <= H-2

    def tap_mask(dh, dw):
        mh, mw = h_ok[dh], w_ok[dw]
        if mh is None:
            return mw
        if mw is None:
            return mh
        return jnp.logical_and(mh, mw)

    # q[kd] = sum_{dh,dw} weight[kd, dh+1, dw+1] * shift(x, dh, dw)   (zero-padded shifts)
    # A (dh, dw) shift collapses to a single lane-roll of the flattened H*W axis; every
    # wrapped / row-crossing lane is exactly a padding lane and is masked off.  The
    # shifted tile t is shared across the three kd weights.
    q = [None, None, None]
    for dh in (-1, 0, 1):
        for dw in (-1, 0, 1):
            d = dh * W + dw
            t = x if d == 0 else pltpu.roll(x, shift=(-d) % HW, axis=1)
            m = tap_mask(dh, dw)
            if m is not None:
                t = jnp.where(m, t, 0.0)
            khw = (dh + 1) * 3 + (dw + 1)
            for kd in range(3):
                term = w_ref[kd * 9 + khw] * t
                q[kd] = term if q[kd] is None else q[kd] + term

    # Channel taps: conv[c] = bias + q0[c-1] + q1[c] + q2[c+1]  (zero outside [0, C)).
    # Sublane rolls may cross batch-element boundaries, but exactly those rows are the
    # masked channel edges, so batch elements never bleed into each other.
    q0s = jnp.where(cid >= 1, pltpu.roll(q[0], shift=1 % R, axis=0), 0.0)
    q2s = jnp.where(cid <= C - 2, pltpu.roll(q[2], shift=(R - 1) % R, axis=0), 0.0)

    conv = b_ref[0] + q0s + q[1] + q2s
    # Folded residual: x * (gamma * sigmoid(conv)) + x == x * (gamma * sigmoid(conv) + 1)
    o_ref[...] = (x * (g_ref[0] * jax.nn.sigmoid(conv) + 1.0)).astype(o_ref.dtype)


def _pick_batch_tile(B, C, HW, itemsize=4, target_bytes=2 << 20):
    """Whole batch elements per block; collapse the grid for small problems."""
    per_b = max(1, C * HW * itemsize)
    if B * per_b <= target_bytes:
        return B                      # single grid step (no per-step overhead)
    cap = max(1, target_bytes // per_b)
    best = None
    for d in range(1, min(B, cap) + 1):
        # Sublane count of the block must be 8-aligned (or equal the full dim, i.e. d == B).
        if B % d == 0 and (d * C) % 8 == 0:
            best = d
    return best if best is not None else B


@jax.jit
def csam_forward(x, conv_w, conv_b, gamma):
    """x: (B, C, H, W) f32; conv_w: (3, 3, 3) f32; conv_b: (1,) f32; gamma: (1,) f32."""
    B, C, H, W = x.shape
    HW = H * W
    x2 = x.reshape(B * C, HW)         # lane-dense layout: lanes = H*W

    bt = _pick_batch_tile(B, C, HW, itemsize=x2.dtype.itemsize)
    grid = (B // bt,)
    rows = bt * C

    kernel = functools.partial(_csam_kernel, C=C, H=H, W=W)

    out2 = pl.pallas_call(
        kernel,
        out_shape=jax.ShapeDtypeStruct((B * C, HW), x.dtype),
        grid=grid,
        in_specs=[
            pl.BlockSpec(memory_space=pltpu.MemorySpace.SMEM),    # conv weights (27,)
            pl.BlockSpec(memory_space=pltpu.MemorySpace.SMEM),    # bias (1,)
            pl.BlockSpec(memory_space=pltpu.MemorySpace.SMEM),    # gamma (1,)
            pl.BlockSpec((rows, HW), lambda i: (i, 0)),           # x
        ],
        out_specs=pl.BlockSpec((rows, HW), lambda i: (i, 0)),
        compiler_params=pltpu.CompilerParams(
            dimension_semantics=("parallel",)),
    )(conv_w.reshape(27).astype(jnp.float32),
      conv_b.astype(jnp.float32),
      gamma.astype(jnp.float32),
      x2)

    return out2.reshape(B, C, H, W)


def csam_reference(x, conv_w, conv_b, gamma):
    """Plain-JAX reference mirroring the PyTorch forward."""
    out = x[:, None]  # (B, 1, C, H, W)
    conv = jax.lax.conv_general_dilated(
        out, conv_w.reshape(1, 1, 3, 3, 3),
        window_strides=(1, 1, 1),
        padding=((1, 1), (1, 1), (1, 1)),
        dimension_numbers=("NCDHW", "OIDHW", "NCDHW"),
    ) + conv_b[0]
    att = gamma[0] * jax.nn.sigmoid(conv)
    att = att.reshape(x.shape)
    return x * att + x


if __name__ == "__main__":
    key = jax.random.PRNGKey(0)
    k_x, k_w, k_b = jax.random.split(key, 3)

    B, C, H, W = 2, 4, 16, 16
    x = jax.random.normal(k_x, (B, C, H, W), dtype=jnp.float32)

    # Parameter shapes from CSAM_Module.__init__:
    #   Conv3d(1, 1, 3, 1, 1): weight (1,1,3,3,3) -> (3,3,3), bias (1,)
    #   gamma: (1,)  (PyTorch inits gamma to 0 = identity; use 0.5 so the attention path
    #   is actually exercised).
    conv_w = 0.05 * jax.random.normal(k_w, (3, 3, 3), dtype=jnp.float32)
    conv_b = 0.1 * jax.random.normal(k_b, (1,), dtype=jnp.float32)
    gamma = jnp.array([0.5], dtype=jnp.float32)

    y = csam_forward(x, conv_w, conv_b, gamma)
    y = jax.block_until_ready(y)

    y_ref = csam_reference(x, conv_w, conv_b, gamma)
    assert y.shape == (B, C, H, W)
    assert jnp.allclose(y, y_ref, atol=1e-5, rtol=1e-5), "mismatch vs reference"

    print("KERNEL_OK")
</pallas_src>

<mosaic_0001>
module attributes {stable_mosaic.version = 11 : i64} {
  func.func @_csam_kernel(%arg0: i32, %arg1: memref<27xf32, #tpu.memory_space<smem>>, %arg2: memref<1xf32, #tpu.memory_space<smem>>, %arg3: memref<1xf32, #tpu.memory_space<smem>>, %arg4: memref<8x256xf32, #tpu.memory_space<vmem>>, %arg5: memref<8x256xf32, #tpu.memory_space<vmem>>) attributes {dimension_semantics = [#tpu.dimension_semantics<parallel>], iteration_bounds = array<i64: 1>, scalar_prefetch = 0 : i64, scratch_operands = 0 : i64, tpu.core_type = #tpu.core_type<tc>, window_params = [{transform_indices = @transform_0, window_bounds = array<i64: 27>}, {transform_indices = @transform_1, window_bounds = array<i64: 1>}, {transform_indices = @transform_2, window_bounds = array<i64: 1>}, {transform_indices = @transform_3, window_bounds = array<i64: 8, 256>}, {transform_indices = @transform_4, window_bounds = array<i64: 8, 256>}]} {
    %c0 = arith.constant 0 : index
    %c0_0 = arith.constant 0 : index
    %0 = vector.load %arg4[%c0, %c0_0] : memref<8x256xf32, #tpu.memory_space<vmem>>, vector<8x256xf32>
    %1 = tpu.iota {dimensions = array<i32: 1>} : vector<8x256xi32>
    %2 = tpu.iota {dimensions = array<i32: 0>} : vector<8x256xi32>
    %c15_i32 = arith.constant 15 : i32
    %3 = vector.broadcast %c15_i32 : i32 to vector<8x256xi32>
    %4 = arith.andi %1, %3 : vector<8x256xi32>
    %c3_i32 = arith.constant 3 : i32
    %5 = vector.broadcast %c3_i32 : i32 to vector<8x256xi32>
    %6 = arith.andi %2, %5 : vector<8x256xi32>
    %c1_i32 = arith.constant 1 : i32
    %7 = vector.broadcast %c1_i32 : i32 to vector<8x256xi32>
    %8 = arith.cmpi sge, %4, %7 : vector<8x256xi32>
    %c14_i32 = arith.constant 14 : i32
    %9 = vector.broadcast %c14_i32 : i32 to vector<8x256xi32>
    %10 = arith.cmpi sle, %4, %9 : vector<8x256xi32>
    %c16_i32 = arith.constant 16 : i32
    %11 = vector.broadcast %c16_i32 : i32 to vector<8x256xi32>
    %12 = arith.cmpi sge, %1, %11 : vector<8x256xi32>
    %c240_i32 = arith.constant 240 : i32
    %13 = vector.broadcast %c240_i32 : i32 to vector<8x256xi32>
    %14 = arith.cmpi slt, %1, %13 : vector<8x256xi32>
    %c17_i32 = arith.constant 17 : i32
    %15 = tpu.dynamic_rotate %0 by %c17_i32 dim 1 : vector<8x256xf32>, i32 -> vector<8x256xf32>
    %16 = arith.andi %12, %8 : vector<8x256xi1>
    %cst = arith.constant 0.000000e+00 : f32
    %17 = vector.broadcast %cst : f32 to vector<8x256xf32>
    %18 = arith.select %16, %15, %17 : vector<8x256xi1>, vector<8x256xf32>
    %c0_1 = arith.constant 0 : index
    %19 = memref.load %arg1[%c0_1] : memref<27xf32, #tpu.memory_space<smem>>
    %20 = vector.broadcast %19 : f32 to vector<8x256xf32>
    %21 = arith.mulf %20, %18 : vector<8x256xf32>
    %c9 = arith.constant 9 : index
    %22 = memref.load %arg1[%c9] : memref<27xf32, #tpu.memory_space<smem>>
    %23 = vector.broadcast %22 : f32 to vector<8x256xf32>
    %24 = arith.mulf %23, %18 : vector<8x256xf32>
    %c18 = arith.constant 18 : index
    %25 = memref.load %arg1[%c18] : memref<27xf32, #tpu.memory_space<smem>>
    %26 = vector.broadcast %25 : f32 to vector<8x256xf32>
    %27 = arith.mulf %26, %18 : vector<8x256xf32>
    %c16_i32_2 = arith.constant 16 : i32
    %28 = tpu.dynamic_rotate %0 by %c16_i32_2 dim 1 : vector<8x256xf32>, i32 -> vector<8x256xf32>
    %cst_3 = arith.constant 0.000000e+00 : f32
    %29 = vector.broadcast %cst_3 : f32 to vector<8x256xf32>
    %30 = arith.select %12, %28, %29 : vector<8x256xi1>, vector<8x256xf32>
    %c1 = arith.constant 1 : index
    %31 = memref.load %arg1[%c1] : memref<27xf32, #tpu.memory_space<smem>>
    %32 = vector.broadcast %31 : f32 to vector<8x256xf32>
    %33 = arith.mulf %32, %30 : vector<8x256xf32>
    %34 = arith.addf %21, %33 : vector<8x256xf32>
    %c10 = arith.constant 10 : index
    %35 = memref.load %arg1[%c10] : memref<27xf32, #tpu.memory_space<smem>>
    %36 = vector.broadcast %35 : f32 to vector<8x256xf32>
    %37 = arith.mulf %36, %30 : vector<8x256xf32>
    %38 = arith.addf %24, %37 : vector<8x256xf32>
    %c19 = arith.constant 19 : index
    %39 = memref.load %arg1[%c19] : memref<27xf32, #tpu.memory_space<smem>>
    %40 = vector.broadcast %39 : f32 to vector<8x256xf32>
    %41 = arith.mulf %40, %30 : vector<8x256xf32>
    %42 = arith.addf %27, %41 : vector<8x256xf32>
    %c15_i32_4 = arith.constant 15 : i32
    %43 = tpu.dynamic_rotate %0 by %c15_i32_4 dim 1 : vector<8x256xf32>, i32 -> vector<8x256xf32>
    %44 = arith.andi %12, %10 : vector<8x256xi1>
    %cst_5 = arith.constant 0.000000e+00 : f32
    %45 = vector.broadcast %cst_5 : f32 to vector<8x256xf32>
    %46 = arith.select %44, %43, %45 : vector<8x256xi1>, vector<8x256xf32>
    %c2 = arith.constant 2 : index
    %47 = memref.load %arg1[%c2] : memref<27xf32, #tpu.memory_space<smem>>
    %48 = vector.broadcast %47 : f32 to vector<8x256xf32>
    %49 = arith.mulf %48, %46 : vector<8x256xf32>
    %50 = arith.addf %34, %49 : vector<8x256xf32>
    %c11 = arith.constant 11 : index
    %51 = memref.load %arg1[%c11] : memref<27xf32, #tpu.memory_space<smem>>
    %52 = vector.broadcast %51 : f32 to vector<8x256xf32>
    %53 = arith.mulf %52, %46 : vector<8x256xf32>
    %54 = arith.addf %38, %53 : vector<8x256xf32>
    %c20 = arith.constant 20 : index
    %55 = memref.load %arg1[%c20] : memref<27xf32, #tpu.memory_space<smem>>
    %56 = vector.broadcast %55 : f32 to vector<8x256xf32>
    %57 = arith.mulf %56, %46 : vector<8x256xf32>
    %58 = arith.addf %42, %57 : vector<8x256xf32>
    %c1_i32_6 = arith.constant 1 : i32
    %59 = tpu.dynamic_rotate %0 by %c1_i32_6 dim 1 : vector<8x256xf32>, i32 -> vector<8x256xf32>
    %cst_7 = arith.constant 0.000000e+00 : f32
    %60 = vector.broadcast %cst_7 : f32 to vector<8x256xf32>
    %61 = arith.select %8, %59, %60 : vector<8x256xi1>, vector<8x256xf32>
    %c3 = arith.constant 3 : index
    %62 = memref.load %arg1[%c3] : memref<27xf32, #tpu.memory_space<smem>>
    %63 = vector.broadcast %62 : f32 to vector<8x256xf32>
    %64 = arith.mulf %63, %61 : vector<8x256xf32>
    %65 = arith.addf %50, %64 : vector<8x256xf32>
    %c12 = arith.constant 12 : index
    %66 = memref.load %arg1[%c12] : memref<27xf32, #tpu.memory_space<smem>>
    %67 = vector.broadcast %66 : f32 to vector<8x256xf32>
    %68 = arith.mulf %67, %61 : vector<8x256xf32>
    %69 = arith.addf %54, %68 : vector<8x256xf32>
    %c21 = arith.constant 21 : index
    %70 = memref.load %arg1[%c21] : memref<27xf32, #tpu.memory_space<smem>>
    %71 = vector.broadcast %70 : f32 to vector<8x256xf32>
    %72 = arith.mulf %71, %61 : vector<8x256xf32>
    %73 = arith.addf %58, %72 : vector<8x256xf32>
    %c4 = arith.constant 4 : index
    %74 = memref.load %arg1[%c4] : memref<27xf32, #tpu.memory_space<smem>>
    %75 = vector.broadcast %74 : f32 to vector<8x256xf32>
    %76 = arith.mulf %75, %0 : vector<8x256xf32>
    %77 = arith.addf %65, %76 : vector<8x256xf32>
    %c13 = arith.constant 13 : index
    %78 = memref.load %arg1[%c13] : memref<27xf32, #tpu.memory_space<smem>>
    %79 = vector.broadcast %78 : f32 to vector<8x256xf32>
    %80 = arith.mulf %79, %0 : vector<8x256xf32>
    %81 = arith.addf %69, %80 : vector<8x256xf32>
    %c22 = arith.constant 22 : index
    %82 = memref.load %arg1[%c22] : memref<27xf32, #tpu.memory_space<smem>>
    %83 = vector.broadcast %82 : f32 to vector<8x256xf32>
    %84 = arith.mulf %83, %0 : vector<8x256xf32>
    %85 = arith.addf %73, %84 : vector<8x256xf32>
    %c255_i32 = arith.constant 255 : i32
    %86 = tpu.dynamic_rotate %0 by %c255_i32 dim 1 : vector<8x256xf32>, i32 -> vector<8x256xf32>
    %cst_8 = arith.constant 0.000000e+00 : f32
    %87 = vector.broadcast %cst_8 : f32 to vector<8x256xf32>
    %88 = arith.select %10, %86, %87 : vector<8x256xi1>, vector<8x256xf32>
    %c5 = arith.constant 5 : index
    %89 = memref.load %arg1[%c5] : memref<27xf32, #tpu.memory_space<smem>>
    %90 = vector.broadcast %89 : f32 to vector<8x256xf32>
    %91 = arith.mulf %90, %88 : vector<8x256xf32>
    %92 = arith.addf %77, %91 : vector<8x256xf32>
    %c14 = arith.constant 14 : index
    %93 = memref.load %arg1[%c14] : memref<27xf32, #tpu.memory_space<smem>>
    %94 = vector.broadcast %93 : f32 to vector<8x256xf32>
    %95 = arith.mulf %94, %88 : vector<8x256xf32>
    %96 = arith.addf %81, %95 : vector<8x256xf32>
    %c23 = arith.constant 23 : index
    %97 = memref.load %arg1[%c23] : memref<27xf32, #tpu.memory_space<smem>>
    %98 = vector.broadcast %97 : f32 to vector<8x256xf32>
    %99 = arith.mulf %98, %88 : vector<8x256xf32>
    %100 = arith.addf %85, %99 : vector<8x256xf32>
    %c241_i32 = arith.constant 241 : i32
    %101 = tpu.dynamic_rotate %0 by %c241_i32 dim 1 : vector<8x256xf32>, i32 -> vector<8x256xf32>
    %102 = arith.andi %14, %8 : vector<8x256xi1>
    %cst_9 = arith.constant 0.000000e+00 : f32
    %103 = vector.broadcast %cst_9 : f32 to vector<8x256xf32>
    %104 = arith.select %102, %101, %103 : vector<8x256xi1>, vector<8x256xf32>
    %c6 = arith.constant 6 : index
    %105 = memref.load %arg1[%c6] : memref<27xf32, #tpu.memory_space<smem>>
    %106 = vector.broadcast %105 : f32 to vector<8x256xf32>
    %107 = arith.mulf %106, %104 : vector<8x256xf32>
    %108 = arith.addf %92, %107 : vector<8x256xf32>
    %c15 = arith.constant 15 : index
    %109 = memref.load %arg1[%c15] : memref<27xf32, #tpu.memory_space<smem>>
    %110 = vector.broadcast %109 : f32 to vector<8x256xf32>
    %111 = arith.mulf %110, %104 : vector<8x256xf32>
    %112 = arith.addf %96, %111 : vector<8x256xf32>
    %c24 = arith.constant 24 : index
    %113 = memref.load %arg1[%c24] : memref<27xf32, #tpu.memory_space<smem>>
    %114 = vector.broadcast %113 : f32 to vector<8x256xf32>
    %115 = arith.mulf %114, %104 : vector<8x256xf32>
    %116 = arith.addf %100, %115 : vector<8x256xf32>
    %c240_i32_10 = arith.constant 240 : i32
    %117 = tpu.dynamic_rotate %0 by %c240_i32_10 dim 1 : vector<8x256xf32>, i32 -> vector<8x256xf32>
    %cst_11 = arith.constant 0.000000e+00 : f32
    %118 = vector.broadcast %cst_11 : f32 to vector<8x256xf32>
    %119 = arith.select %14, %117, %118 : vector<8x256xi1>, vector<8x256xf32>
    %c7 = arith.constant 7 : index
    %120 = memref.load %arg1[%c7] : memref<27xf32, #tpu.memory_space<smem>>
    %121 = vector.broadcast %120 : f32 to vector<8x256xf32>
    %122 = arith.mulf %121, %119 : vector<8x256xf32>
    %123 = arith.addf %108, %122 : vector<8x256xf32>
    %c16 = arith.constant 16 : index
    %124 = memref.load %arg1[%c16] : memref<27xf32, #tpu.memory_space<smem>>
    %125 = vector.broadcast %124 : f32 to vector<8x256xf32>
    %126 = arith.mulf %125, %119 : vector<8x256xf32>
    %127 = arith.addf %112, %126 : vector<8x256xf32>
    %c25 = arith.constant 25 : index
    %128 = memref.load %arg1[%c25] : memref<27xf32, #tpu.memory_space<smem>>
    %129 = vector.broadcast %128 : f32 to vector<8x256xf32>
    %130 = arith.mulf %129, %119 : vector<8x256xf32>
    %131 = arith.addf %116, %130 : vector<8x256xf32>
    %c239_i32 = arith.constant 239 : i32
    %132 = tpu.dynamic_rotate %0 by %c239_i32 dim 1 : vector<8x256xf32>, i32 -> vector<8x256xf32>
    %133 = arith.andi %14, %10 : vector<8x256xi1>
    %cst_12 = arith.constant 0.000000e+00 : f32
    %134 = vector.broadcast %cst_12 : f32 to vector<8x256xf32>
    %135 = arith.select %133, %132, %134 : vector<8x256xi1>, vector<8x256xf32>
    %c8 = arith.constant 8 : index
    %136 = memref.load %arg1[%c8] : memref<27xf32, #tpu.memory_space<smem>>
    %137 = vector.broadcast %136 : f32 to vector<8x256xf32>
    %138 = arith.mulf %137, %135 : vector<8x256xf32>
    %139 = arith.addf %123, %138 : vector<8x256xf32>
    %c17 = arith.constant 17 : index
    %140 = memref.load %arg1[%c17] : memref<27xf32, #tpu.memory_space<smem>>
    %141 = vector.broadcast %140 : f32 to vector<8x256xf32>
    %142 = arith.mulf %141, %135 : vector<8x256xf32>
    %143 = arith.addf %127, %142 : vector<8x256xf32>
    %c26 = arith.constant 26 : index
    %144 = memref.load %arg1[%c26] : memref<27xf32, #tpu.memory_space<smem>>
    %145 = vector.broadcast %144 : f32 to vector<8x256xf32>
    %146 = arith.mulf %145, %135 : vector<8x256xf32>
    %147 = arith.addf %131, %146 : vector<8x256xf32>
    %c1_i32_13 = arith.constant 1 : i32
    %148 = vector.broadcast %c1_i32_13 : i32 to vector<8x256xi32>
    %149 = arith.cmpi sge, %6, %148 : vector<8x256xi32>
    %c1_i32_14 = arith.constant 1 : i32
    %150 = tpu.dynamic_rotate %139 by %c1_i32_14 dim 0 : vector<8x256xf32>, i32 -> vector<8x256xf32>
    %cst_15 = arith.constant 0.000000e+00 : f32
    %151 = vector.broadcast %cst_15 : f32 to vector<8x256xf32>
    %152 = arith.select %149, %150, %151 : vector<8x256xi1>, vector<8x256xf32>
    %c2_i32 = arith.constant 2 : i32
    %153 = vector.broadcast %c2_i32 : i32 to vector<8x256xi32>
    %154 = arith.cmpi sle, %6, %153 : vector<8x256xi32>
    %c7_i32 = arith.constant 7 : i32
    %155 = tpu.dynamic_rotate %147 by %c7_i32 dim 0 : vector<8x256xf32>, i32 -> vector<8x256xf32>
    %cst_16 = arith.constant 0.000000e+00 : f32
    %156 = vector.broadcast %cst_16 : f32 to vector<8x256xf32>
    %157 = arith.select %154, %155, %156 : vector<8x256xi1>, vector<8x256xf32>
    %c0_17 = arith.constant 0 : index
    %158 = memref.load %arg2[%c0_17] : memref<1xf32, #tpu.memory_space<smem>>
    %159 = vector.broadcast %158 : f32 to vector<8x256xf32>
    %160 = arith.addf %159, %152 : vector<8x256xf32>
    %161 = arith.addf %160, %143 : vector<8x256xf32>
    %162 = arith.addf %161, %157 : vector<8x256xf32>
    %c0_18 = arith.constant 0 : index
    %163 = memref.load %arg3[%c0_18] : memref<1xf32, #tpu.memory_space<smem>>
    %164 = arith.negf %162 : vector<8x256xf32>
    %165 = math.exp %164 : vector<8x256xf32>
    %cst_19 = arith.constant 1.000000e+00 : f32
    %166 = vector.broadcast %cst_19 : f32 to vector<8x256xf32>
    %167 = arith.addf %166, %165 : vector<8x256xf32>
    %168 = arith.divf %166, %167 : vector<8x256xf32>
    %169 = vector.broadcast %163 : f32 to vector<8x256xf32>
    %170 = arith.mulf %169, %168 : vector<8x256xf32>
    %cst_20 = arith.constant 1.000000e+00 : f32
    %171 = vector.broadcast %cst_20 : f32 to vector<8x256xf32>
    %172 = arith.addf %170, %171 : vector<8x256xf32>
    %173 = arith.mulf %0, %172 : vector<8x256xf32>
    %c0_21 = arith.constant 0 : index
    %c0_22 = arith.constant 0 : index
    %174 = vector.load %arg5[%c0_21, %c0_22] : memref<8x256xf32, #tpu.memory_space<vmem>>, vector<8x256xf32>
    tpu.vector_store %arg5[%c0_21, %c0_22], %173 {strides = array<i32>} : memref<8x256xf32, #tpu.memory_space<vmem>>, vector<8x256xf32>,
    return
  }
  func.func @transform_0(%arg0: i32) -> i32 {
    %c0_i32 = arith.constant 0 : i32
    %c0_i32_0 = arith.constant 0 : i32
    return %c0_i32 : i32
  }
  func.func @transform_1(%arg0: i32) -> i32 {
    %c0_i32 = arith.constant 0 : i32
    %c0_i32_0 = arith.constant 0 : i32
    return %c0_i32 : i32
  }
  func.func @transform_2(%arg0: i32) -> i32 {
    %c0_i32 = arith.constant 0 : i32
    %c0_i32_0 = arith.constant 0 : i32
    return %c0_i32 : i32
  }
  func.func @transform_3(%arg0: i32) -> (i32, i32) {
    %c0_i32 = arith.constant 0 : i32
    %c0_i32_0 = arith.constant 0 : i32
    return %arg0, %c0_i32 : i32, i32
  }
  func.func @transform_4(%arg0: i32) -> (i32, i32) {
    %c0_i32 = arith.constant 0 : i32
    %c0_i32_0 = arith.constant 0 : i32
    return %arg0, %c0_i32 : i32, i32
  }
}

</mosaic_0001>

<llo_original>
// kernel: csam_forward.1
$region0: #{csam_forward.1}
  #allocation0 [shape = 'u32[]', space=smem, size = 0x4, offset = 0x4, fixed_abs, tag = 'smem constant byte address 0x4 - core index']
  #allocation1 [shape = 'u32[144,128]{1,0:T(1,128)}', space=vmem, size = 0x12000, scoped, tag = 'internal scratch']
  #allocation2 [shape = 'f32[1]{0:T(128)S(6)}', space=smem, size = 0x200, scoped, tag = 'scoped memory for csam_forward.1']
  #allocation3 [shape = 'f32[1]{0:T(128)S(6)}', space=smem, size = 0x200, scoped, tag = 'scoped memory for csam_forward.1']
  %s0 = inlined_call_operand.vmem [shape: f32[27], index: 0, kind: input, shape index: {}]
  %s1 = inlined_call_operand.<no memory space> [shape: f32[1], index: 1, kind: input, shape index: {}]
  %s2 = inlined_call_operand.<no memory space> [shape: f32[1], index: 2, kind: input, shape index: {}]
  %s3 = inlined_call_operand.vmem [shape: f32[8,256], index: 3, kind: input, shape index: {}]
  %s4 = inlined_call_operand.vmem [shape: f32[8,256], index: 4, kind: output, shape index: {}]
  %s5 = sld [smem:[#allocation0]]
  $region30: #{csam_forward.1} parent=0
    _
  %s7 = ssub.s32 1, %s5
  %s8 = scalar_select 0, %s7, %s5
  %9 = sst [smem:[#allocation2]] %s1
  %10 = sst [smem:[#allocation3]] %s2
  $region1: #{csam_forward.1} parent=0
    #allocation4 [shape = 'u8[512]{0}', space=smem, size = 0x200, scoped, tag = 'input window, operand 0, single buffered']
    #allocation5 [shape = 's32[1]{0}', space=sflag, size = 0x4, scoped, tag = 'scoped memory for csam_forward.1']
    %11 = vsyncpa [#allocation5], 0
    // Predicated region
    $region2: #{csam_forward.1} parent=1 // pred_check
      _
    $region3: #{csam_forward.1} parent=1 // pred_check_branch
      %13 = sbr.rel (0) target = $region5
    $region4: #{csam_forward.1} parent=1 // pred_region
      %s15 = ssub.s32 16, 16
      %16 = vsyncadd [#allocation5], %s15
      %s18 = sshll.u32 %s0, 4
      %s19 = int_to_ptr.vmem [resolvable:$true] %s18
      %21 = dma.vmem_to_smem %s19, 16, [#allocation4], [#allocation5]
    $region5: #{csam_forward.1} parent=1 // pred_fallthru
      _
    // Predicated region
    $region6: #{csam_forward.1} parent=1 // pred_check
      _
    $region7: #{csam_forward.1} parent=1 // pred_check_branch
      %23 = sbr.rel (0) target = $region9
    $region8: #{csam_forward.1} parent=1 // pred_region
      _
    $region9: #{csam_forward.1} parent=1 // pred_fallthru
      _
    // Predicated region
    $region10: #{csam_forward.1} parent=1 // pred_check
      _
    $region11: #{csam_forward.1} parent=1 // pred_check_branch
      %25 = sbr.rel (0) target = $region13
    $region12: #{csam_forward.1} parent=1 // pred_region
      _
    $region13: #{csam_forward.1} parent=1 // pred_fallthru
      _
    // Predicated region
    $region14: #{csam_forward.1} parent=1 // pred_check
      _
    $region15: #{csam_forward.1} parent=1 // pred_check_branch
      %27 = sbr.rel (0) target = $region17
    $region16: #{csam_forward.1} parent=1 // pred_region
      _
    $region17: #{csam_forward.1} parent=1 // pred_fallthru
      _
    // Predicated region
    $region18: #{csam_forward.1} parent=1 // pred_check
      _
    $region19: #{csam_forward.1} parent=1 // pred_check_branch
      %29 = sbr.rel (0) target = $region21
    $region20: #{csam_forward.1} parent=1 // pred_region
      %30 = dma.done [#allocation5], 16
    $region21: #{csam_forward.1} parent=1 // pred_fallthru
      _
    %31 = sfence
    %v32 = vld [vmem:[%s3] sm:$0xff]
    %v33 = vld [vmem:[%s3 + $0x8] sm:$0xff]
    %v34 = vlaneseq
    %v35 = vand.u32 %v34, 127
    %v36 = vadd.s32 %v35, 128
    %v37 = vlaneseq
    %v38 = vshrl.u32 %v37, 7
    %v39 = vand.u32 %v35, 15
    %v40 = vand.u32 %v36, 15
    %v41 = vand.u32 %v38, 3
    %vm42 = vcmp.ge.s32.totalorder %v39, 1
    %vm43 = vcmp.ge.s32.totalorder %v40, 1
    %vm44 = vcmp.le.s32.totalorder %v39, 14
    %vm45 = vcmp.le.s32.totalorder %v40, 14
    %vm46 = vcmp.ge.s32.totalorder %v35, 16
    %vm47 = vcmp.ge.s32.totalorder %v36, 16
    %vm48 = vcmp.lt.s32.totalorder %v35, 240
    %vm49 = vcmp.lt.s32.totalorder %v36, 240
    %50 = vrot.lane.b32.xlu0 %v32, 17
    %v51 = vpop.permute.xlu0 %50
    %52 = vrot.lane.b32.xlu0 %v33, 17
    %v53 = vpop.permute.xlu0 %52
    %vm54 = vcmp.lt.s32.totalorder %v35, 17
    %v55 = vsel %vm54, %v51, %v53
    %v56 = vsel %vm54, %v53, %v51
    %vm57 = vmand %vm46, %vm42
    %vm58 = vmand %vm47, %vm43
    %v59 = vsel %vm57, %v56, 0.0
    %v60 = vsel %vm58, %v55, 0.0
    %s61 = sld [smem:[#allocation4]]
    %v62 = vstv %s61
    %v63 = vmul.f32 %v62, %v59
    %v64 = vmul.f32 %v62, %v60
    %s65 = sld [smem:[#allocation4 + $0x9]]
    %v66 = vstv %s65
    %v67 = vmul.f32 %v66, %v59
    %v68 = vmul.f32 %v66, %v60
    %s69 = sld [smem:[#allocation4 + $0x12]]
    %v70 = vstv %s69
    %v71 = vmul.f32 %v70, %v59
    %v72 = vmul.f32 %v70, %v60
    %73 = vrot.lane.b32.xlu0 %v32, 16
    %v74 = vpop.permute.xlu0 %73
    %75 = vrot.lane.b32.xlu0 %v33, 16
    %v76 = vpop.permute.xlu0 %75
    %vm77 = vcmp.lt.s32.totalorder %v35, 16
    %v78 = vsel %vm77, %v74, %v76
    %v79 = vsel %vm77, %v76, %v74
    %v80 = vsel %vm46, %v79, 0.0
    %v81 = vsel %vm47, %v78, 0.0
    %s82 = sld [smem:[#allocation4 + $0x1]]
    %v83 = vstv %s82
    %v84 = vmul.f32 %v83, %v80
    %v85 = vmul.f32 %v83, %v81
    %v86 = vadd.f32 %v63, %v84
    %v87 = vadd.f32 %v64, %v85
    %s88 = sld [smem:[#allocation4 + $0xa]]
    %v89 = vstv %s88
    %v90 = vmul.f32 %v89, %v80
    %v91 = vmul.f32 %v89, %v81
    %v92 = vadd.f32 %v67, %v90
    %v93 = vadd.f32 %v68, %v91
    %s94 = sld [smem:[#allocation4 + $0x13]]
    %v95 = vstv %s94
    %v96 = vmul.f32 %v95, %v80
    %v97 = vmul.f32 %v95, %v81
    %v98 = vadd.f32 %v71, %v96
    %v99 = vadd.f32 %v72, %v97
    %100 = vrot.lane.b32.xlu0 %v32, 15
    %v101 = vpop.permute.xlu0 %100
    %102 = vrot.lane.b32.xlu0 %v33, 15
    %v103 = vpop.permute.xlu0 %102
    %vm104 = vcmp.lt.s32.totalorder %v35, 15
    %v105 = vsel %vm104, %v101, %v103
    %v106 = vsel %vm104, %v103, %v101
    %vm107 = vmand %vm46, %vm44
    %vm108 = vmand %vm47, %vm45
    %v109 = vsel %vm107, %v106, 0.0
    %v110 = vsel %vm108, %v105, 0.0
    %s111 = sld [smem:[#allocation4 + $0x2]]
    %v112 = vstv %s111
    %v113 = vmul.f32 %v112, %v109
    %v114 = vmul.f32 %v112, %v110
    %v115 = vadd.f32 %v86, %v113
    %v116 = vadd.f32 %v87, %v114
    %s117 = sld [smem:[#allocation4 + $0xb]]
    %v118 = vstv %s117
    %v119 = vmul.f32 %v118, %v109
    %v120 = vmul.f32 %v118, %v110
    %v121 = vadd.f32 %v92, %v119
    %v122 = vadd.f32 %v93, %v120
    %s123 = sld [smem:[#allocation4 + $0x14]]
    %v124 = vstv %s123
    %v125 = vmul.f32 %v124, %v109
    %v126 = vmul.f32 %v124, %v110
    %v127 = vadd.f32 %v98, %v125
    %v128 = vadd.f32 %v99, %v126
    %129 = vrot.lane.b32.xlu0 %v32, 1
    %v130 = vpop.permute.xlu0 %129
    %131 = vrot.lane.b32.xlu0 %v33, 1
    %v132 = vpop.permute.xlu0 %131
    %vm133 = vcmp.lt.s32.totalorder %v35, 1
    %v134 = vsel %vm133, %v130, %v132
    %v135 = vsel %vm133, %v132, %v130
    %v136 = vsel %vm42, %v135, 0.0
    %v137 = vsel %vm43, %v134, 0.0
    %s138 = sld [smem:[#allocation4 + $0x3]]
    %v139 = vstv %s138
    %v140 = vmul.f32 %v139, %v136
    %v141 = vmul.f32 %v139, %v137
    %v142 = vadd.f32 %v115, %v140
    %v143 = vadd.f32 %v116, %v141
    %s144 = sld [smem:[#allocation4 + $0xc]]
    %v145 = vstv %s144
    %v146 = vmul.f32 %v145, %v136
    %v147 = vmul.f32 %v145, %v137
    %v148 = vadd.f32 %v121, %v146
    %v149 = vadd.f32 %v122, %v147
    %s150 = sld [smem:[#allocation4 + $0x15]]
    %v151 = vstv %s150
    %v152 = vmul.f32 %v151, %v136
    %v153 = vmul.f32 %v151, %v137
    %v154 = vadd.f32 %v127, %v152
    %v155 = vadd.f32 %v128, %v153
    %s156 = sld [smem:[#allocation4 + $0x4]]
    %v157 = vstv %s156
    %v158 = vmul.f32 %v157, %v32
    %v159 = vmul.f32 %v157, %v33
    %v160 = vadd.f32 %v142, %v158
    %v161 = vadd.f32 %v143, %v159
    %s162 = sld [smem:[#allocation4 + $0xd]]
    %v163 = vstv %s162
    %v164 = vmul.f32 %v163, %v32
    %v165 = vmul.f32 %v163, %v33
    %v166 = vadd.f32 %v148, %v164
    %v167 = vadd.f32 %v149, %v165
    %s168 = sld [smem:[#allocation4 + $0x16]]
    %v169 = vstv %s168
    %v170 = vmul.f32 %v169, %v32
    %v171 = vmul.f32 %v169, %v33
    %v172 = vadd.f32 %v154, %v170
    %v173 = vadd.f32 %v155, %v171
    %174 = vrot.lane.b32.xlu0 %v32, 127
    %v175 = vpop.permute.xlu0 %174
    %176 = vrot.lane.b32.xlu0 %v33, 127
    %v177 = vpop.permute.xlu0 %176
    %vm178 = vcmp.lt.s32.totalorder %v35, 127
    %v179 = vsel %vm178, %v175, %v177
    %v180 = vsel %vm178, %v177, %v175
    %v181 = vsel %vm44, %v179, 0.0
    %v182 = vsel %vm45, %v180, 0.0
    %s183 = sld [smem:[#allocation4 + $0x5]]
    %v184 = vstv %s183
    %v185 = vmul.f32 %v184, %v181
    %v186 = vmul.f32 %v184, %v182
    %v187 = vadd.f32 %v160, %v185
    %v188 = vadd.f32 %v161, %v186
    %s189 = sld [smem:[#allocation4 + $0xe]]
    %v190 = vstv %s189
    %v191 = vmul.f32 %v190, %v181
    %v192 = vmul.f32 %v190, %v182
    %v193 = vadd.f32 %v166, %v191
    %v194 = vadd.f32 %v167, %v192
    %s195 = sld [smem:[#allocation4 + $0x17]]
    %v196 = vstv %s195
    %v197 = vmul.f32 %v196, %v181
    %v198 = vmul.f32 %v196, %v182
    %v199 = vadd.f32 %v172, %v197
    %v200 = vadd.f32 %v173, %v198
    %201 = vrot.lane.b32.xlu0 %v32, 113
    %v202 = vpop.permute.xlu0 %201
    %203 = vrot.lane.b32.xlu0 %v33, 113
    %v204 = vpop.permute.xlu0 %203
    %vm205 = vcmp.lt.s32.totalorder %v35, 113
    %v206 = vsel %vm205, %v202, %v204
    %v207 = vsel %vm205, %v204, %v202
    %vm208 = vmand %vm48, %vm42
    %vm209 = vmand %vm49, %vm43
    %v210 = vsel %vm208, %v206, 0.0
    %v211 = vsel %vm209, %v207, 0.0
    %s212 = sld [smem:[#allocation4 + $0x6]]
    %v213 = vstv %s212
    %v214 = vmul.f32 %v213, %v210
    %v215 = vmul.f32 %v213, %v211
    %v216 = vadd.f32 %v187, %v214
    %v217 = vadd.f32 %v188, %v215
    %s218 = sld [smem:[#allocation4 + $0xf]]
    %v219 = vstv %s218
    %v220 = vmul.f32 %v219, %v210
    %v221 = vmul.f32 %v219, %v211
    %v222 = vadd.f32 %v193, %v220
    %v223 = vadd.f32 %v194, %v221
    %s224 = sld [smem:[#allocation4 + $0x18]]
    %v225 = vstv %s224
    %v226 = vmul.f32 %v225, %v210
    %v227 = vmul.f32 %v225, %v211
    %v228 = vadd.f32 %v199, %v226
    %v229 = vadd.f32 %v200, %v227
    %230 = vrot.lane.b32.xlu0 %v32, 112
    %v231 = vpop.permute.xlu0 %230
    %232 = vrot.lane.b32.xlu0 %v33, 112
    %v233 = vpop.permute.xlu0 %232
    %vm234 = vcmp.lt.s32.totalorder %v35, 112
    %v235 = vsel %vm234, %v231, %v233
    %v236 = vsel %vm234, %v233, %v231
    %v237 = vsel %vm48, %v235, 0.0
    %v238 = vsel %vm49, %v236, 0.0
    %s239 = sld [smem:[#allocation4 + $0x7]]
    %v240 = vstv %s239
    %v241 = vmul.f32 %v240, %v237
    %v242 = vmul.f32 %v240, %v238
    %v243 = vadd.f32 %v216, %v241
    %v244 = vadd.f32 %v217, %v242
    %s245 = sld [smem:[#allocation4 + $0x10]]
    %v246 = vstv %s245
    %v247 = vmul.f32 %v246, %v237
    %v248 = vmul.f32 %v246, %v238
    %v249 = vadd.f32 %v222, %v247
    %v250 = vadd.f32 %v223, %v248
    %s251 = sld [smem:[#allocation4 + $0x19]]
    %v252 = vstv %s251
    %v253 = vmul.f32 %v252, %v237
    %v254 = vmul.f32 %v252, %v238
    %v255 = vadd.f32 %v228, %v253
    %v256 = vadd.f32 %v229, %v254
    %257 = vrot.lane.b32.xlu0 %v32, 111
    %v258 = vpop.permute.xlu0 %257
    %259 = vrot.lane.b32.xlu0 %v33, 111
    %v260 = vpop.permute.xlu0 %259
    %vm261 = vcmp.lt.s32.totalorder %v35, 111
    %v262 = vsel %vm261, %v258, %v260
    %v263 = vsel %vm261, %v260, %v258
    %vm264 = vmand %vm48, %vm44
    %vm265 = vmand %vm49, %vm45
    %v266 = vsel %vm264, %v262, 0.0
    %v267 = vsel %vm265, %v263, 0.0
    %s268 = sld [smem:[#allocation4 + $0x8]]
    %v269 = vstv %s268
    %v270 = vmul.f32 %v269, %v266
    %v271 = vmul.f32 %v269, %v267
    %v272 = vadd.f32 %v243, %v270
    %v273 = vadd.f32 %v244, %v271
    %s274 = sld [smem:[#allocation4 + $0x11]]
    %v275 = vstv %s274
    %v276 = vmul.f32 %v275, %v266
    %v277 = vmul.f32 %v275, %v267
    %v278 = vadd.f32 %v249, %v276
    %v279 = vadd.f32 %v250, %v277
    %s280 = sld [smem:[#allocation4 + $0x1a]]
    %v281 = vstv %s280
    %v282 = vmul.f32 %v281, %v266
    %v283 = vmul.f32 %v281, %v267
    %v284 = vadd.f32 %v255, %v282
    %v285 = vadd.f32 %v256, %v283
    %vm286 = vcmp.ge.s32.totalorder %v41, 1
    %v287 = vrot.slane %v272, 7
    %v288 = vrot.slane %v273, 7
    %v289 = vsel %vm286, %v287, 0.0
    %v290 = vsel %vm286, %v288, 0.0
    %vm291 = vcmp.le.s32.totalorder %v41, 2
    %v292 = vrot.slane %v284, 1
    %v293 = vrot.slane %v285, 1
    %v294 = vsel %vm291, %v292, 0.0
    %v295 = vsel %vm291, %v293, 0.0
    %s296 = sld [smem:[#allocation2]]
    %v297 = vstv %s296
    %v298 = vadd.f32 %v297, %v289
    %v299 = vadd.f32 %v297, %v290
    %v300 = vadd.f32 %v298, %v278
    %v301 = vadd.f32 %v299, %v279
    %v302 = vadd.f32 %v300, %v294
    %v303 = vadd.f32 %v301, %v295
    %s304 = sld [smem:[#allocation3]]
    %v305 = vxor.u32 %v302, 2147483648
    %v306 = vxor.u32 %v303, 2147483648
    %v307 = vmul.f32 %v305, 1.442695
    %v308 = vpow.pop %v307
    %v309 = vmul.f32 %v306, 1.442695
    %v310 = vpow.pop %v309
    %v311 = vadd.f32 %v308, 1.0
    %v312 = vadd.f32 %v310, 1.0
    %v313 = vrcp.pop %v311
    %v314 = vmul.f32 1.0, %v313
    %v315 = vrcp.pop %v312
    %v316 = vmul.f32 1.0, %v315
    %v317 = vstv %s304
    %v318 = vmul.f32 %v317, %v314
    %v319 = vmul.f32 %v317, %v316
    %v320 = vadd.f32 %v318, 1.0
    %v321 = vadd.f32 %v319, 1.0
    %v322 = vmul.f32 %v32, %v320
    %v323 = vmul.f32 %v33, %v321
    %324 = vst [vmem:[%s4] sm:$0xff] %v322
    %325 = vst [vmem:[%s4 + $0x8] sm:$0xff] %v323
    // Predicated region
    $region22: #{csam_forward.1} parent=1 // pred_check
      _
    $region23: #{csam_forward.1} parent=1 // pred_check_branch
      %327 = sbr.rel (0) target = $region25
    $region24: #{csam_forward.1} parent=1 // pred_region
      _
    $region25: #{csam_forward.1} parent=1 // pred_fallthru
      _
    // Predicated region
    $region26: #{csam_forward.1} parent=1 // pred_check
      _
    $region27: #{csam_forward.1} parent=1 // pred_check_branch
      %329 = sbr.rel (0) target = $region29
    $region28: #{csam_forward.1} parent=1 // pred_region
      _
    $region29: #{csam_forward.1} parent=1 // pred_fallthru
      _
    %330 = vsyncpa [#allocation5], 1

</llo_original>
